<compile_context>
chip_gen: v7x
topology: tpu7x:2x2x1
jax: 0.10.0
libtpu: 0.0.40
codegen_flags: <defaults>
</compile_context>

<pallas_src>
import numpy as np
import jax
import jax.numpy as jnp
from jax.experimental import pallas as pl
from jax.experimental.pallas import tpu as pltpu


def _length_regulator_kernel(cd_ref, x_ref, o_ref):
    # cd_ref: (2, S) int32   row 0 = exclusive cumsum (frame start), row 1 = duration
    # x_ref:  (S, D_pad)     phoneme hidden vectors (batch dim squeezed)
    # o_ref:  (tT, D_pad)    one time-tile of the expanded output
    tT = o_ref.shape[0]
    S = x_ref.shape[0]

    t0 = pl.program_id(1) * tT                       # start frame of this tile

    cd = cd_ref[...]                                 # (2, S) int32
    lo_rel = cd[0:1, :] - t0                         # (1, S)  start rel. to tile
    dur_u = pltpu.bitcast(cd[1:2, :], jnp.uint32)    # (1, S)  durations (>= 0)

    # mask[t, i] = (0 <= t - lo_rel[i] < dur[i])  via a single unsigned compare
    t_local = jax.lax.broadcasted_iota(jnp.int32, (tT, S), 0)
    rel = t_local - lo_rel                           # (tT, S) int32
    mask = pltpu.bitcast(rel, jnp.uint32) < dur_u    # (tT, S) bool

    # One-hot rows -> exact even in bf16; keep matmul in x's dtype, accumulate f32.
    m = mask.astype(x_ref.dtype)
    o_ref[...] = jnp.dot(
        m, x_ref[...], preferred_element_type=jnp.float32
    ).astype(o_ref.dtype)


def _pick_time_tile(T, tile_t):
    """Choose (tT, T_pad), preferring no time padding (T % tT == 0)."""
    r8 = lambda v: ((v + 7) // 8) * 8
    # (a) single full-extent tile when small enough (no padding at all; block
    #     equal to the full dim is allowed even when T is not a multiple of 8)
    if T <= tile_t:
        return T, T
    if r8(T) <= 2 * tile_t:
        tT = r8(T)
        return tT, tT
    # (b) largest multiple-of-8 divisor of T in [128, tile_t] -> no time padding
    for tT in range((tile_t // 8) * 8, 127, -8):
        if T % tT == 0:
            return tT, T
    # (c) fall back to padding (slice stripped in the wrapper)
    tT = max(8, (tile_t // 8) * 8)
    return tT, ((T + tT - 1) // tT) * tT


def length_regulator(x, duration, max_len, *, tile_t=512):
    """x: [B, S, D] float; duration: [B, S] int; max_len: static int.

    Returns (output [B, max_len, D], mel_len [B] int32).
    """
    assert max_len is not None, "max_len must be a static int for the TPU kernel"

    B, S, D = x.shape
    T = int(max_len)

    dur = jnp.maximum(duration.astype(jnp.int32), 0)       # clamp like max(d, 0)
    cum_hi = jnp.cumsum(dur, axis=-1)                        # inclusive cumsum (glue)
    cum_lo = cum_hi - dur                                    # exclusive cumsum (glue)
    mel_len = cum_hi[:, -1].astype(jnp.int32)                # expanded lengths (glue)

    # merged per-phoneme scalars: (B, 2, S) = [cum_lo; dur]  -> one DMA per batch
    cd = jnp.stack([cum_lo, dur], axis=1)

    # --- lane-dense output: pad hidden dim to a multiple of 128 if needed ----
    if D % 128 == 0:
        D_pad, x_p = D, x
    else:
        D_pad = max(128, ((D + 127) // 128) * 128)
        x_p = jnp.pad(x, ((0, 0), (0, 0), (0, D_pad - D)))

    # --- time tiling: prefer T % tT == 0 so no post-kernel slice copy --------
    tT, T_pad = _pick_time_tile(T, int(tile_t))
    n_t = T_pad // tT

    itemsize = jnp.dtype(x.dtype).itemsize
    cost = pl.CostEstimate(
        flops=2 * B * T_pad * S * D_pad,
        transcendentals=0,
        bytes_accessed=(B * S * D_pad + B * T_pad * D_pad) * itemsize
        + 2 * B * S * 4,
    )

    out = pl.pallas_call(
        _length_regulator_kernel,
        out_shape=jax.ShapeDtypeStruct((B, T_pad, D_pad), x.dtype),
        # b outer / t inner is load-bearing: x and cd blocks are constant in t,
        # so they stay VMEM-resident across all time tiles of a batch.
        grid=(B, n_t),
        in_specs=[
            pl.BlockSpec((pl.Squeezed(), 2, S), lambda b, t: (b, 0, 0)),
            pl.BlockSpec((pl.Squeezed(), S, D_pad), lambda b, t: (b, 0, 0)),
        ],
        out_specs=pl.BlockSpec((pl.Squeezed(), tT, D_pad), lambda b, t: (b, t, 0)),
        compiler_params=pltpu.CompilerParams(
            # Both axes independent -> megacore sharding on v7x; sequential
            # loop elsewhere.  (For B==1 v7x occupancy, the t axis is parallel.)
            dimension_semantics=("parallel", "parallel"),
        ),
        cost_estimate=cost,
    )(cd, x_p)

    # strip padding only if any was added (otherwise: no extra HBM pass)
    if T_pad != T or D_pad != D:
        out = out[:, :T, :D]
    return out, mel_len


def _reference_length_regulator(x, duration, max_len):
    """Numpy reference replicating the PyTorch LR/expand/pad loop."""
    B, S, D = x.shape
    out = np.zeros((B, max_len, D), dtype=np.float32)
    mel_len = np.zeros((B,), dtype=np.int32)
    for b in range(B):
        t = 0
        for i in range(S):
            d = max(int(duration[b, i]), 0)
            for _ in range(d):
                if t < max_len:
                    out[b, t] = x[b, i]
                t += 1
        mel_len[b] = t
    return out, mel_len


if __name__ == "__main__":
    key = jax.random.PRNGKey(0)
    k_x, k_d = jax.random.split(key)

    B, S, D = 2, 8, 32
    max_len = 24

    x = jax.random.normal(k_x, (B, S, D), dtype=jnp.float32)
    duration = jax.random.randint(k_d, (B, S), 0, 4, dtype=jnp.int32)

    ref_out, ref_len = _reference_length_regulator(
        np.asarray(x), np.asarray(duration), max_len
    )

    # 1) default tile (single full-extent time tile)
    out, mel_len = length_regulator(x, duration, max_len)
    out = jax.block_until_ready(out)
    mel_len = jax.block_until_ready(mel_len)
    np.testing.assert_allclose(np.asarray(out), ref_out, rtol=1e-5, atol=1e-5)
    np.testing.assert_array_equal(np.asarray(mel_len), ref_len)

    # 2) small tile -> multiple time tiles (exercises the (b, t, 0) index_map)
    out2, mel_len2 = length_regulator(x, duration, max_len, tile_t=8)
    out2 = jax.block_until_ready(out2)
    np.testing.assert_allclose(np.asarray(out2), ref_out, rtol=1e-5, atol=1e-5)
    np.testing.assert_array_equal(np.asarray(mel_len2), ref_len)

    # 3) bf16 activations end-to-end (one-hot selection is exact in bf16)
    x_bf = x.astype(jnp.bfloat16)
    out_bf, mel_len_bf = length_regulator(x_bf, duration, max_len)
    out_bf = jax.block_until_ready(out_bf)
    ref_bf, _ = _reference_length_regulator(
        np.asarray(x_bf, dtype=np.float32), np.asarray(duration), max_len
    )
    np.testing.assert_allclose(
        np.asarray(out_bf, dtype=np.float32), ref_bf, rtol=0, atol=1e-6
    )
    np.testing.assert_array_equal(np.asarray(mel_len_bf), ref_len)

    print("KERNEL_OK")
</pallas_src>

<mosaic_0001>
module attributes {stable_mosaic.version = 11 : i64} {
  func.func @_length_regulator_kernel(%arg0: i32, %arg1: i32, %arg2: memref<1x2x8xi32, #tpu.memory_space<vmem>>, %arg3: memref<1x8x128xf32, #tpu.memory_space<vmem>>, %arg4: memref<1x24x128xf32, #tpu.memory_space<vmem>>) attributes {dimension_semantics = [#tpu.dimension_semantics<parallel>, #tpu.dimension_semantics<parallel>], iteration_bounds = array<i64: 2, 1>, scalar_prefetch = 0 : i64, scratch_operands = 0 : i64, tpu.core_type = #tpu.core_type<tc>, window_params = [{transform_indices = @transform_0, window_bounds = array<i64: 1, 2, 8>}, {transform_indices = @transform_1, window_bounds = array<i64: 1, 8, 128>}, {transform_indices = @transform_2, window_bounds = array<i64: 1, 24, 128>}]} {
    %c24_i32 = arith.constant 24 : i32
    %0 = arith.muli %arg1, %c24_i32 : i32
    %c0 = arith.constant 0 : index
    %c0_0 = arith.constant 0 : index
    %c0_1 = arith.constant 0 : index
    %1 = vector.load %arg2[%c0, %c0_0, %c0_1] : memref<1x2x8xi32, #tpu.memory_space<vmem>>, vector<1x2x8xi32>
    %2 = vector.shape_cast %1 : vector<1x2x8xi32> to vector<2x8xi32>
    %3 = vector.extract_strided_slice %2 {offsets = [0, 0], sizes = [1, 8], strides = [1, 1]} : vector<2x8xi32> to vector<1x8xi32>
    %4 = vector.broadcast %0 : i32 to vector<1x8xi32>
    %5 = arith.subi %3, %4 : vector<1x8xi32>
    %6 = vector.extract_strided_slice %2 {offsets = [1, 0], sizes = [1, 8], strides = [1, 1]} : vector<2x8xi32> to vector<1x8xi32>
    %7 = tpu.bitcast %6 : vector<1x8xi32> -> vector<1x8xi32>
    %8 = tpu.iota {dimensions = array<i32: 0>} : vector<24x8xi32>
    %9 = vector.broadcast %5 : vector<1x8xi32> to vector<24x8xi32>
    %10 = arith.subi %8, %9 : vector<24x8xi32>
    %11 = tpu.bitcast %10 : vector<24x8xi32> -> vector<24x8xi32>
    %12 = vector.broadcast %7 : vector<1x8xi32> to vector<24x8xi32>
    %13 = arith.cmpi ult, %11, %12 : vector<24x8xi32>
    %14 = arith.extui %13 : vector<24x8xi1> to vector<24x8xi32>
    %15 = arith.sitofp %14 : vector<24x8xi32> to vector<24x8xf32>
    %c0_2 = arith.constant 0 : index
    %c0_3 = arith.constant 0 : index
    %c0_4 = arith.constant 0 : index
    %16 = vector.load %arg3[%c0_2, %c0_3, %c0_4] : memref<1x8x128xf32, #tpu.memory_space<vmem>>, vector<1x8x128xf32>
    %17 = vector.shape_cast %16 : vector<1x8x128xf32> to vector<8x128xf32>
    %cst = arith.constant dense<0.000000e+00> : vector<24x128xf32>
    %18 = tpu.matmul %15, %17, %cst {dimension_numbers = #tpu.dot_dimension_numbers<[1], [0], [0], [1], [0, 0, 1, 1], [], []>} : vector<24x8xf32>, vector<8x128xf32>, vector<24x128xf32> -> vector<24x128xf32>
    %c0_5 = arith.constant 0 : index
    %c0_6 = arith.constant 0 : index
    %c0_7 = arith.constant 0 : index
    %19 = vector.load %arg4[%c0_5, %c0_6, %c0_7] : memref<1x24x128xf32, #tpu.memory_space<vmem>>, vector<1x24x128xf32>
    %20 = vector.shape_cast %19 : vector<1x24x128xf32> to vector<24x128xf32>
    %21 = vector.shape_cast %18 : vector<24x128xf32> to vector<1x24x128xf32>
    tpu.vector_store %arg4[%c0_5, %c0_6, %c0_7], %21 {strides = array<i32>} : memref<1x24x128xf32, #tpu.memory_space<vmem>>, vector<1x24x128xf32>,
    return
  }
  func.func @transform_0(%arg0: i32, %arg1: i32) -> (i32, i32, i32) {
    %c0_i32 = arith.constant 0 : i32
    %c0_i32_0 = arith.constant 0 : i32
    %c0_i32_1 = arith.constant 0 : i32
    return %arg0, %c0_i32, %c0_i32_0 : i32, i32, i32
  }
  func.func @transform_1(%arg0: i32, %arg1: i32) -> (i32, i32, i32) {
    %c0_i32 = arith.constant 0 : i32
    %c0_i32_0 = arith.constant 0 : i32
    %c0_i32_1 = arith.constant 0 : i32
    return %arg0, %c0_i32, %c0_i32_0 : i32, i32, i32
  }
  func.func @transform_2(%arg0: i32, %arg1: i32) -> (i32, i32, i32) {
    %c0_i32 = arith.constant 0 : i32
    %c0_i32_0 = arith.constant 0 : i32
    return %arg0, %arg1, %c0_i32 : i32, i32, i32
  }
}

</mosaic_0001>

<llo_original>
// kernel: tpu_custom_call.1
$region0: #{tpu_custom_call.1}
  #allocation0 [shape = 'u32[]', space=smem, size = 0x4, offset = 0x4, fixed_abs, tag = 'smem constant byte address 0x4 - core index']
  #allocation1 [shape = 'u32[144,128]{1,0:T(1,128)}', space=vmem, size = 0x12000, scoped, tag = 'internal scratch']
  %s0 = inlined_call_operand.hbm [shape: s32[2,2,8], index: 0, kind: input, shape index: {}]
  %s1 = inlined_call_operand.hbm [shape: f32[2,8,128], index: 1, kind: input, shape index: {}]
  %s2 = inlined_call_operand.hbm [shape: f32[2,24,128], index: 2, kind: output, shape index: {}]
  %s3 = sld [smem:[#allocation0]]
  $region49: #{tpu_custom_call.1} parent=0
    _
  %s5 = ssub.s32 1, %s3
  %s6 = scalar_select 0, %s5, %s3
  $region1: #{tpu_custom_call.1} parent=0
    #allocation2 [shape = 'u8[2048]{0}', space=vmem, size = 0x800, scoped, tag = 'input window, operand 0']
    #allocation3 [shape = 's32[2]{0}', space=sflag, size = 0x8, scoped, tag = 'scoped memory for tpu_custom_call.1']
    #allocation4 [shape = 's32[2]{0}', space=sflag, size = 0x8, scoped, tag = 'scoped memory for tpu_custom_call.1']
    #allocation5 [shape = 'u8[8192]{0}', space=vmem, size = 0x2000, scoped, tag = 'input window, operand 1']
    #allocation6 [shape = 's32[2]{0}', space=sflag, size = 0x8, scoped, tag = 'scoped memory for tpu_custom_call.1']
    #allocation7 [shape = 'u8[24576]{0}', space=vmem, size = 0x6000, scoped, tag = 'output window, operand 0']
    %7 = vsyncpa [#allocation3], 0
    %s8 = scalar_lea.sflag [#allocation3], 1
    %9 = vsyncpa %s8, 0
    %10 = vsyncpa [#allocation6], 0
    %s11 = scalar_lea.sflag [#allocation6], 1
    %12 = vsyncpa %s11, 0
    %13 = vsyncpa [#allocation4], 0
    %s14 = scalar_lea.sflag [#allocation4], 1
    %15 = vsyncpa %s14, 0
    loop: start=0, step=1, limit=4
    $region2: #{tpu_custom_call.1} parent=1 // loop_pre_header
      _
    $region3: #{tpu_custom_call.1} parent=1 // loop_header
      %s17 = sphi 0, %s21
      %p18 = scmp.ge.s32.totalorder %s17, 4
      %s24 = sphi 0, %s36
      %s25 = sphi 0, %s32
      %s26 = sphi 0, %s24
      %s27 = sphi 0, %s25
      %s28 = sphi 0, %s26
      %s29 = sphi 0, %s27
      %s39 = sphi 0, %s41
      %s42 = sphi 0, %s39
      %s43 = sphi 0, %s42
      %s59 = sphi 0, %s43
      %s65 = sphi 0, %s67
      %s68 = sphi 0, %s65
      %s69 = sphi 0, %s68
      %s85 = sphi 0, %s69
      %s93 = sphi 0, %s95
      %s96 = sphi 0, %s93
      %s97 = sphi 0, %s96
      %s113 = sphi 0, %s97
    $region4: #{tpu_custom_call.1} parent=1 // loop_header_branch
      %20 = sbr.rel (%p18) target = $region8
    $region5: #{tpu_custom_call.1} parent=1 // loop_body
      %s22 = ssub.s32 %s17, 1
      %s23 = ssub.s32 %s17, 2
      %s30 = sadd.s32 1, %s25
      %p31 = scmp.ge.s32.totalorder %s30, 1
      %s32 = scalar_select %p31, 0, %s30
      %s33 = sadd.s32 1, %s24
      %s34 = scalar_select %p31, %s33, %s24
      %p35 = scmp.ge.s32.totalorder %s34, 2
      %s36 = scalar_select %p35, 0, %s34
      %s37 = ssub.s32 %s24, %s36
      %p38 = scmp.eq.s32.totalorder %s37, 0
      %s40 = sadd.s32 %s39, 1
      %s41 = scalar_select %p38, %s39, %s40
      %p44 = pneg %p38
      %p45 = scmp.eq.s32.totalorder %s17, 1
      %p46 = por %p44, %p45
      %p47 = scmp.ne.s32.totalorder %s39, %s42
      %p48 = scmp.eq.s32.totalorder %s17, 0
      %p49 = por %p47, %p48
      %p50 = scmp.ne.s32.totalorder %s39, %s42
      %p51 = scmp.eq.s32.totalorder %s22, 1
      %p52 = por %p50, %p51
      %p53 = scmp.ne.s32.totalorder %s42, %s43
      %p54 = scmp.eq.s32.totalorder %s22, 0
      %p55 = por %p53, %p54
      %p56 = scmp.ne.s32.totalorder %s42, %s43
      %p57 = scmp.eq.s32.totalorder %s23, 1
      %p58 = por %p56, %p57
      %p60 = scmp.ne.s32.totalorder %s43, %s59
      %p61 = scmp.eq.s32.totalorder %s23, 0
      %p62 = por %p60, %p61
      %s63 = ssub.s32 %s24, %s36
      %p64 = scmp.eq.s32.totalorder %s63, 0
      %s66 = sadd.s32 %s65, 1
      %s67 = scalar_select %p64, %s65, %s66
      %p70 = pneg %p64
      %p71 = scmp.eq.s32.totalorder %s17, 1
      %p72 = por %p70, %p71
      %p73 = scmp.ne.s32.totalorder %s65, %s68
      %p74 = scmp.eq.s32.totalorder %s17, 0
      %p75 = por %p73, %p74
      %p76 = scmp.ne.s32.totalorder %s65, %s68
      %p77 = scmp.eq.s32.totalorder %s22, 1
      %p78 = por %p76, %p77
      %p79 = scmp.ne.s32.totalorder %s68, %s69
      %p80 = scmp.eq.s32.totalorder %s22, 0
      %p81 = por %p79, %p80
      %p82 = scmp.ne.s32.totalorder %s68, %s69
      %p83 = scmp.eq.s32.totalorder %s23, 1
      %p84 = por %p82, %p83
      %p86 = scmp.ne.s32.totalorder %s69, %s85
      %p87 = scmp.eq.s32.totalorder %s23, 0
      %p88 = por %p86, %p87
      %s89 = ssub.s32 %s24, %s36
      %s90 = ssub.s32 %s25, %s32
      %s91 = sor.u32 %s89, %s90
      %p92 = scmp.eq.s32.totalorder %s91, 0
      %s94 = sadd.s32 %s93, 1
      %s95 = scalar_select %p92, %s93, %s94
      %p98 = pneg %p92
      %p99 = scmp.eq.s32.totalorder %s17, 1
      %p100 = por %p98, %p99
      %p101 = scmp.ne.s32.totalorder %s93, %s96
      %p102 = scmp.eq.s32.totalorder %s17, 0
      %p103 = por %p101, %p102
      %p104 = scmp.ne.s32.totalorder %s93, %s96
      %p105 = scmp.eq.s32.totalorder %s22, 1
      %p106 = por %p104, %p105
      %p107 = scmp.ne.s32.totalorder %s96, %s97
      %p108 = scmp.eq.s32.totalorder %s22, 0
      %p109 = por %p107, %p108
      %p110 = scmp.ne.s32.totalorder %s96, %s97
      %p111 = scmp.eq.s32.totalorder %s23, 1
      %p112 = por %p110, %p111
      %p114 = scmp.ne.s32.totalorder %s97, %s113
      %p115 = scmp.eq.s32.totalorder %s23, 0
      %p116 = por %p114, %p115
      %p117 = scmp.le.s32.totalorder 1, %s17
      %p118 = scmp.lt.s32.totalorder %s17, 3
      %p119 = pnand %p117, %p118
      %p120 = pneg %p119
      // Predicated region
      $region9: #{tpu_custom_call.1} parent=5 // pred_check
        _
      $region10: #{tpu_custom_call.1} parent=5 // pred_check_branch
        %122 = sbr.rel (%p119) target = $region12
      $region11: #{tpu_custom_call.1} parent=5 // pred_region
        %s123 = ssub.s32 %s17, 1
      $region12: #{tpu_custom_call.1} parent=5 // pred_fallthru
        _
      %p124 = scmp.lt.s32.totalorder %s17, 2
      // Predicated region
      $region13: #{tpu_custom_call.1} parent=5 // pred_check
        %p125 = pneg %p124
      $region14: #{tpu_custom_call.1} parent=5 // pred_check_branch
        %127 = sbr.rel (%p125) target = $region16
      $region15: #{tpu_custom_call.1} parent=5 // pred_region
        // Predicated region
        $region17: #{tpu_custom_call.1} parent=15 // pred_check
          %p128 = pneg %p49
        $region18: #{tpu_custom_call.1} parent=15 // pred_check_branch
          %130 = sbr.rel (%p128) target = $region20
        $region19: #{tpu_custom_call.1} parent=15 // pred_region
          %s131 = sand.u32 %s39, 1
          %s132 = scalar_lea.sflag [#allocation3], %s131
          %s133 = sand.u32 %s39, 1
          %s134 = smul.addr %s133, 2
          %s135 = scalar_lea.vmem [#allocation2], %s134
          %s137 = ssub.s32 32, 32
          %138 = vsyncadd %s132, %s137
          %s139 = smul.addr %s24, 32
          %s140 = scalar_lea.hbm %s0, %s139
          %s142 = sshll.u32 %s135, 4
          %s143 = int_to_ptr.vmem [resolvable:$true] %s142
          %145 = dma.hbm_to_vmem [thread:$0]  %s140, 32, %s143, %s132
        $region20: #{tpu_custom_call.1} parent=15 // pred_fallthru
          _
        // Predicated region
        $region21: #{tpu_custom_call.1} parent=15 // pred_check
          %p146 = pneg %p75
        $region22: #{tpu_custom_call.1} parent=15 // pred_check_branch
          %148 = sbr.rel (%p146) target = $region24
        $region23: #{tpu_custom_call.1} parent=15 // pred_region
          %s149 = sand.u32 %s65, 1
          %s150 = scalar_lea.sflag [#allocation6], %s149
          %s151 = sand.u32 %s65, 1
          %s152 = smul.addr %s151, 8
          %s153 = scalar_lea.vmem [#allocation5], %s152
          %s155 = ssub.s32 128, 128
          %156 = vsyncadd %s150, %s155
          %s157 = smul.addr %s24, 128
          %s158 = scalar_lea.hbm %s1, %s157
          %s160 = sshll.u32 %s153, 4
          %s161 = int_to_ptr.vmem [resolvable:$true] %s160
          %163 = dma.hbm_to_vmem [thread:$0]  %s158, 128, %s161, %s150
        $region24: #{tpu_custom_call.1} parent=15 // pred_fallthru
          _
      $region16: #{tpu_custom_call.1} parent=5 // pred_fallthru
        _
      %p164 = scmp.le.s32.totalorder 1, %s17
      %p165 = scmp.lt.s32.totalorder %s17, 3
      %p166 = pnand %p164, %p165
      %p167 = pneg %p166
      // Predicated region
      $region25: #{tpu_custom_call.1} parent=5 // pred_check
        _
      $region26: #{tpu_custom_call.1} parent=5 // pred_check_branch
        %169 = sbr.rel (%p166) target = $region28
      $region27: #{tpu_custom_call.1} parent=5 // pred_region
        %s170 = ssub.s32 %s17, 1
        %s171 = sand.u32 %s42, 1
        %s172 = scalar_lea.sflag [#allocation3], %s171
        %s173 = sand.u32 %s42, 1
        %s174 = smul.addr %s173, 2
        %s175 = scalar_lea.vmem [#allocation2], %s174
        // Predicated region
        $region29: #{tpu_custom_call.1} parent=27 // pred_check
          %p176 = pneg %p55
        $region30: #{tpu_custom_call.1} parent=27 // pred_check_branch
          %178 = sbr.rel (%p176) target = $region32
        $region31: #{tpu_custom_call.1} parent=27 // pred_region
          %179 = dma.done %s172, 32
        $region32: #{tpu_custom_call.1} parent=27 // pred_fallthru
          _
        %s180 = sand.u32 %s68, 1
        %s181 = scalar_lea.sflag [#allocation6], %s180
        %s182 = sand.u32 %s68, 1
        %s183 = smul.addr %s182, 8
        %s184 = scalar_lea.vmem [#allocation5], %s183
        // Predicated region
        $region33: #{tpu_custom_call.1} parent=27 // pred_check
          %p185 = pneg %p81
        $region34: #{tpu_custom_call.1} parent=27 // pred_check_branch
          %187 = sbr.rel (%p185) target = $region36
        $region35: #{tpu_custom_call.1} parent=27 // pred_region
          %188 = dma.done %s181, 128
        $region36: #{tpu_custom_call.1} parent=27 // pred_fallthru
          _
        %s189 = sand.u32 %s42, 1
        %s190 = scalar_lea.sflag [#allocation3], %s189
        %s191 = sand.u32 %s42, 1
        %s192 = smul.addr %s191, 2
        %s193 = scalar_lea.vmem [#allocation2], %s192
        %p194 = pneg %p55
        %p195 = pneg %p52
        %s196 = sand.u32 %s68, 1
        %s197 = scalar_lea.sflag [#allocation6], %s196
        %s198 = sand.u32 %s68, 1
        %s199 = smul.addr %s198, 8
        %s200 = scalar_lea.vmem [#allocation5], %s199
        %p201 = pneg %p81
        %p202 = pneg %p78
        %p203 = pneg %p109
        %p204 = pneg %p106
        %s205 = sand.u32 %s96, 1
        %s206 = scalar_lea.sflag [#allocation4], %s205
        %s207 = sand.u32 %s96, 1
        %s208 = smul.addr %s207, 24
        %s209 = scalar_lea.vmem [#allocation7], %s208
        %s210 = smul.u32 3, %s27
        %s211 = smul.u32 %s27, 24
        %v212 = vld [vmem:[%s175] sm:$0x3]
        %v213 = vstv %s211
        %v214 = vsub.s32 %v212, %v213
        %v215 = vlaneseq
        %v216 = vshrl.u32 %v215, 7
        %v217 = vadd.s32 %v216, 8
        %v218 = vadd.s32 %v216, 16
        %v219 = vlaneseq
        %v220 = vshrl.u32 %v219, 7
        %v221 = vsub.s32 0, %v220
        %v222 = vrot.slane %v214, %v221
        %v223 = vsub.s32 %v216, %v222
        %v224 = vsub.s32 %v217, %v222
        %v225 = vsub.s32 %v218, %v222
        %v226 = vlaneseq
        %v227 = vshrl.u32 %v226, 7
        %v228 = vsub.s32 1, %v227
        %v229 = vrot.slane %v212, %v228
        %vm230 = vcmp.lt.u32.totalorder %v223, %v229
        %vm231 = vcmp.lt.u32.totalorder %v224, %v229
        %vm232 = vcmp.lt.u32.totalorder %v225, %v229
        %v233 = vsel %vm230, 1, 0
        %v234 = vsel %vm231, 1, 0
        %v235 = vsel %vm232, 1, 0
        %v236 = vcvt.s32.f32 %v233
        %v237 = vcvt.s32.f32 %v234
        %v238 = vcvt.s32.f32 %v235
        %v239 = vld [vmem:[%s184] sm:$0xff]
        %vm240 = vcmask 64512
        %v242 = vsel %vm240, %v236, 0
        %v245 = vsel %vm240, %v237, 0
        %v248 = vsel %vm240, %v238, 0
        %250 = vmatprep.subr.mxu0 0.0
        %251 = vmatpush1.msra.mxu0 %v239
        %252 = vmatprep.subr.mxu0 0.0
        %253 = vmatpush1.msra.mxu0 0.0
        %254 = vmatprep.subr.mxu0 0.0
        %255 = vmatpush1.msra.mxu0 0.0
        %256 = vmatprep.subr.mxu0 0.0
        %257 = vmatpush1.msra.mxu0 0.0
        %258 = vmatprep.subr.mxu0 0.0
        %259 = vmatpush1.msra.mxu0 0.0
        %260 = vmatprep.subr.mxu0 0.0
        %261 = vmatpush1.msra.mxu0 0.0
        %262 = vmatprep.subr.mxu0 0.0
        %263 = vmatpush1.msra.mxu0 0.0
        %264 = vmatprep.subr.mxu0 0.0
        %265 = vmatpush1.msra.mxu0 0.0
        %266 = vmatprep.subr.mxu0 0.0
        %267 = vmatpush1.msra.mxu0 0.0
        %268 = vmatprep.subr.mxu0 0.0
        %269 = vmatpush1.msra.mxu0 0.0
        %270 = vmatprep.subr.mxu0 0.0
        %271 = vmatpush1.msra.mxu0 0.0
        %272 = vmatprep.subr.mxu0 0.0
        %273 = vmatpush1.msra.mxu0 0.0
        %274 = vmatprep.subr.mxu0 0.0
        %275 = vmatpush1.msra.mxu0 0.0
        %276 = vmatprep.subr.mxu0 0.0
        %277 = vmatpush1.msra.mxu0 0.0
        %278 = vmatprep.subr.mxu0 0.0
        %279 = vmatpush1.msra.mxu0 0.0
        %280 = vmatprep.subr.mxu0 0.0
        %281 = vmatpush1.msra.mxu0 0.0
        %282 = vmatprep.subr.mxu0 0.0
        %283 = vmatpush1.msra.mxu0 0.0
        %284 = vmatprep.subr.mxu0 0.0
        %285 = vmatpush1.msra.mxu0 0.0
        %286 = vmatprep.subr.mxu0 0.0
        %287 = vmatpush1.msra.mxu0 0.0
        %288 = vmatprep.subr.mxu0 0.0
        %289 = vmatpush1.msra.mxu0 0.0
        %290 = vmatprep.subr.mxu0 0.0
        %291 = vmatpush1.msra.mxu0 0.0
        %292 = vmatprep.subr.mxu0 0.0
        %293 = vmatpush1.msra.mxu0 0.0
        %294 = vmatprep.subr.mxu0 0.0
        %295 = vmatpush1.msra.mxu0 0.0
        %296 = vmatprep.subr.mxu0 0.0
        %297 = vmatpush1.msra.mxu0 0.0
        %298 = vmatprep.subr.mxu0 0.0
        %299 = vmatpush1.msra.mxu0 0.0
        %300 = vmatprep.subr.mxu0 0.0
        %301 = vmatpush1.msra.mxu0 0.0
        %302 = vmatprep.subr.mxu0 0.0
        %303 = vmatpush1.msra.mxu0 0.0
        %304 = vmatprep.subr.mxu0 0.0
        %305 = vmatpush1.msra.mxu0 0.0
        %306 = vmatprep.subr.mxu0 0.0
        %307 = vmatpush1.msra.mxu0 0.0
        %308 = vmatprep.subr.mxu0 0.0
        %309 = vmatpush1.msra.mxu0 0.0
        %310 = vmatprep.subr.mxu0 0.0
        %311 = vmatpush1.msra.mxu0 0.0
        %312 = vmatprep.subr.mxu0 0.0
        %313 = vmatpush1.msra.mxu0 0.0
        %314 = vmatprep.mubr.f32.mxu0 0.0
        %315 = vmatmul.mubr.f32.gmra.mrb[0].mxu0 %v242
        %v316 = vpop.f32.mrb[0].mxu0
        %v317 = vadd.f32 0.0, %v316
        %v318 = vpop.f32.mrb[0].mxu0
        %319 = vmatprep.mubr.f32.mxu0 0.0
        %320 = vmatmul.mubr.f32.gmra.mrb[0].mxu0 %v245
        %v321 = vpop.f32.mrb[0].mxu0
        %v322 = vadd.f32 0.0, %v321
        %v323 = vpop.f32.mrb[0].mxu0
        %324 = vmatprep.mubr.f32.mxu0 0.0
        %325 = vmatmul.mubr.f32.gmra.mrb[0].mxu0 %v248
        %v326 = vpop.f32.mrb[0].mxu0
        %v327 = vadd.f32 0.0, %v326
        %v328 = vpop.f32.mrb[0].mxu0
        %329 = vdwg.mxu0
        %330 = vst [vmem:[%s209] sm:$0xff] %v317
        %331 = vst [vmem:[%s209 + $0x8] sm:$0xff] %v322
        %332 = vst [vmem:[%s209 + $0x10] sm:$0xff] %v327
        %s333 = sand.u32 %s96, 1
        %s334 = scalar_lea.sflag [#allocation4], %s333
        %s335 = sand.u32 %s96, 1
        %s336 = smul.addr %s335, 24
        %s337 = scalar_lea.vmem [#allocation7], %s336
        // Predicated region
        $region37: #{tpu_custom_call.1} parent=27 // pred_check
          %p338 = pneg %p106
        $region38: #{tpu_custom_call.1} parent=27 // pred_check_branch
          %340 = sbr.rel (%p338) target = $region40
        $region39: #{tpu_custom_call.1} parent=27 // pred_region
          %s341 = smul.u32 3, %s27
          %s343 = ssub.s32 384, 384
          %344 = vsyncadd %s334, %s343
          %s345 = smul.addr %s26, 3
          %s346 = sadd.s32 %s341, %s345
          %s347 = smul.addr %s346, 128
          %s348 = scalar_lea.hbm %s2, %s347
          %s349 = sshll.u32 %s337, 4
          %s350 = int_to_ptr.vmem [resolvable:$true] %s349
          %355 = dma.vmem_to_hbm [thread:$0]  %s350, 384, %s348, %s334, 128, 128, 8
        $region40: #{tpu_custom_call.1} parent=27 // pred_fallthru
          _
      $region28: #{tpu_custom_call.1} parent=5 // pred_fallthru
        _
      %p356 = scmp.le.s32.totalorder 2, %s17
      // Predicated region
      $region41: #{tpu_custom_call.1} parent=5 // pred_check
        %p357 = pneg %p356
      $region42: #{tpu_custom_call.1} parent=5 // pred_check_branch
        %359 = sbr.rel (%p357) target = $region44
      $region43: #{tpu_custom_call.1} parent=5 // pred_region
        %s360 = ssub.s32 %s17, 2
        // Predicated region
        $region45: #{tpu_custom_call.1} parent=43 // pred_check
          %p361 = pneg %p112
        $region46: #{tpu_custom_call.1} parent=43 // pred_check_branch
          %363 = sbr.rel (%p361) target = $region48
        $region47: #{tpu_custom_call.1} parent=43 // pred_region
          %s364 = sand.u32 %s97, 1
          %s365 = scalar_lea.sflag [#allocation4], %s364
          %s366 = sand.u32 %s97, 1
          %s367 = smul.addr %s366, 24
          %s368 = scalar_lea.vmem [#allocation7], %s367
          %369 = dma.done %s365, 384
        $region48: #{tpu_custom_call.1} parent=43 // pred_fallthru
          _
      $region44: #{tpu_custom_call.1} parent=5 // pred_fallthru
        _
    $region6: #{tpu_custom_call.1} parent=1 // loop_footer
      %s21 = sadd.s32 1, %s17
    $region7: #{tpu_custom_call.1} parent=1 // loop_footer_branch
      %16 = sbr.rel target = $region3
    $region8: #{tpu_custom_call.1} parent=1 // loop_exit
      _
    %370 = vsyncpa [#allocation3], 1
    %s371 = scalar_lea.sflag [#allocation3], 1
    %372 = vsyncpa %s371, 1
    %373 = vsyncpa [#allocation6], 1
    %s374 = scalar_lea.sflag [#allocation6], 1
    %375 = vsyncpa %s374, 1
    %376 = vsyncpa [#allocation4], 1
    %s377 = scalar_lea.sflag [#allocation4], 1
    %378 = vsyncpa %s377, 1

</llo_original>
